<compile_context>
chip_gen: v6e
topology: v6e:2x2x1
jax: 0.10.0
libtpu: 0.0.40
codegen_flags: <defaults>
</compile_context>

<pallas_src>
import numpy as np
import jax
import jax.numpy as jnp
from jax import lax
from jax.experimental import pallas as pl
from jax.experimental.pallas import tpu as pltpu


# ----------------------------------------------------------------------------
# small host-side helpers
# ----------------------------------------------------------------------------
def _round_up(v: int, m: int) -> int:
    return ((v + m - 1) // m) * m


def make_delta(out_size: int) -> np.ndarray:
    """Second-difference matrix, as in STD.delta()."""
    n = out_size + 1
    c = np.zeros(n, dtype=np.float64)
    c[0], c[1], c[2] = 1.0, -2.0, 1.0
    T2 = np.zeros((n, n), dtype=np.float64)
    for i in range(n):
        for j in range(i + 1):
            if i - j < 3:
                T2[i, j] = c[i - j]
    T2[0, 0] = 0.0
    T2[1, 0] = -1.0
    return T2


def maxeig_np(X) -> float:
    """Square of the largest singular value (matches STD.maxeig)."""
    return float(np.linalg.norm(np.asarray(X, np.float64), 2) ** 2)


# ----------------------------------------------------------------------------
# Pallas kernel: the whole FISTA loop inside one kernel invocation.
# ----------------------------------------------------------------------------
def make_fista_kernel(max_iter: int):
    def kernel(scal_ref, d2_ref, x_ref, py_ref, mask_ref, y0_ref, icnt_ref,
               a_out, ax_out):
        two_tau = scal_ref[0]          # 2 * tau
        thr = scal_ref[1]              # tau * lambda_2
        eps2 = scal_ref[2]             # eps ** 2
        neg_thr = scal_ref[3]          # -(tau * lambda_2)

        x = x_ref[...]                 # (Dp, Wp), zero-padded
        y = py_ref[...]                # (L, Wp)
        msk = mask_ref[...]            # (L, Wp)
        d2 = d2_ref[...]               # (L, L)  == lambda_1 * Delta^T Delta
        icnt = icnt_ref[...]           # (1, Wp) 1/anti-diag counts (tail only)

        L, Dp = a_out.shape
        Wp = ax_out.shape[1]

        def cond(state):
            t, run, _a, _A, _B, _AX, _yk = state
            return jnp.logical_and(run > 0, t < max_iter)

        def body(state):
            t, _run, a2d, A, B, AX, yk = state

            # FISTA momentum recursion, kept in the vector domain (EUP sqrt).
            a_new2d = 0.5 * (1.0 + jnp.sqrt(1.0 + 4.0 * a2d * a2d))   # (1,1)
            mom2d = (a2d - 1.0) / a_new2d                             # (1,1)

            # grad = lambda_1 * Delta^T Delta A + (mask * (A x - y)) x^T
            res = msk * (AX - y)
            grad = jnp.dot(d2, A, preferred_element_type=jnp.float32)
            grad = grad + lax.dot_general(
                res, x, (((1,), (1,)), ((), ())),
                preferred_element_type=jnp.float32)

            A_t = B - two_tau * grad
            A_new = A_t - jnp.clip(A_t, neg_thr, thr)     # soft threshold
            B_new = A + mom2d * (A_new - A)
            AX_new = jnp.dot(A_new, x, preferred_element_type=jnp.float32)

            # Hankel anti-diagonal sums: one strided roll (row i shifted by i
            # along the lane axis) + one sublane reduce.  Padded columns of
            # AX_new are exactly zero, so the modular wrap contributes nothing.
            skew = pltpu.roll(AX_new, shift=0, axis=1, stride=1, stride_axis=0)
            ax_tail = jnp.sum(skew, axis=0, keepdims=True) * icnt     # (1, Wp)

            # Convergence over the last (L-1) hankel entries (the "tail"):
            # sqrt(sum(diff^2)/sum(ref^2)) <= eps, evaluated in squared form.
            # TODO(synk): nrmse_loss is undefined in the reference code; this
            # NRMSE definition is a best guess.
            diff = ax_tail - yk
            num2d = jnp.sum(diff * diff, axis=1, keepdims=True)       # (1,1)
            den2d = jnp.sum(yk * yk, axis=1, keepdims=True)           # (1,1)
            run2d = (num2d > eps2 * den2d).astype(jnp.int32)          # (1,1)
            run_new = run2d[0, 0]                                     # scalar

            return (t + 1, run_new, a_new2d, A_new, B_new, AX_new, ax_tail)

        init = (jnp.array(0, jnp.int32),
                jnp.array(1, jnp.int32),
                jnp.ones((1, 1), jnp.float32),
                jnp.zeros((L, Dp), jnp.float32),     # A
                jnp.zeros((L, Dp), jnp.float32),     # B
                jnp.zeros((L, Wp), jnp.float32),     # A @ x
                y0_ref[...])                         # hankel tail y_k

        _, _, _, A_fin, _, AX_fin, _ = lax.while_loop(cond, body, init)

        a_out[...] = A_fin
        ax_out[...] = AX_fin

    return kernel


# ----------------------------------------------------------------------------
# Module wrapper
# ----------------------------------------------------------------------------
class STDPallas:
    """Pallas/TPU port of the PyTorch STD module's forward pass."""

    def __init__(self, in_feature, in_size, out_size,
                 lambda_1=0.1, lambda_2=0.1, max_iter=100, eps=1e-5):
        self.in_feature = in_feature
        self.in_size = in_size
        self.out_size = out_size
        self.lambda_1 = float(lambda_1)
        self.lambda_2 = float(lambda_2)
        self.max_iter = int(max_iter)
        self.eps = float(eps)

        self.Delta = make_delta(out_size)                    # (L, L)
        self.eig = maxeig_np(self.Delta)
        # D2 = lambda_1 * Delta^T Delta folded into one constant matrix.
        self.D2 = jnp.asarray(self.lambda_1 * (self.Delta.T @ self.Delta),
                              dtype=jnp.float32)

    def forward(self, x, part_y, mask, key):
        # TODO(synk): initA != None path of the reference is not implemented
        # (A and B always start from zeros, as with the default initA=None).
        d, m = x.shape
        l = self.out_size + 1
        assert part_y.shape[0] == l
        K = l + m - 1
        Dp = _round_up(d, 128)
        Wp = _round_up(K, 128)

        # host-side scalar setup (matches the PyTorch module)
        tau = 1.0 / (2.0 * (maxeig_np(np.asarray(x)) + self.lambda_1 * self.eig))
        lam2 = self.lambda_2
        if tau * lam2 > 0.1:
            lam2 = 0.1 / tau

        # lane-padded operands (padding columns are zero => math unchanged)
        x_p = jnp.zeros((Dp, Wp), jnp.float32).at[:d, :m].set(
            jnp.asarray(x, jnp.float32))
        y_p = jnp.zeros((l, Wp), jnp.float32).at[:, :m].set(
            jnp.asarray(part_y, jnp.float32))
        m_p = jnp.zeros((l, Wp), jnp.float32).at[:, :m].set(
            jnp.asarray(mask, jnp.float32))

        # random y_0 (only its last l-1 "tail" entries are ever used)
        y0 = jax.random.uniform(key, (K,), dtype=jnp.float32)
        y0_tail = jnp.zeros((1, Wp), jnp.float32).at[0, m:K].set(y0[m:])

        # 1/count for the hankel anti-diagonal average (tail entries only).
        # If the y0 tail were all zeros this criterion trips instantly
        # (den = 0), matching the reference's degenerate behavior.
        cnt = np.zeros((1, Wp), np.float32)
        for k in range(m, K):
            cnt[0, k] = sum(1 for i in range(l) if 0 <= k - i < m)
        icnt = jnp.asarray(
            np.where(cnt > 0, 1.0 / np.maximum(cnt, 1.0), 0.0), jnp.float32)

        thr = tau * lam2
        scal = jnp.asarray([2.0 * tau, thr, self.eps * self.eps, -thr],
                           jnp.float32)

        kernel = make_fista_kernel(self.max_iter)
        a_pad, ax_pad = pl.pallas_call(
            kernel,
            out_shape=(jax.ShapeDtypeStruct((l, Dp), jnp.float32),
                       jax.ShapeDtypeStruct((l, Wp), jnp.float32)),
            in_specs=[
                pl.BlockSpec(memory_space=pltpu.MemorySpace.SMEM),  # scalars
                pl.BlockSpec(memory_space=pltpu.MemorySpace.VMEM),  # D2
                pl.BlockSpec(memory_space=pltpu.MemorySpace.VMEM),  # x
                pl.BlockSpec(memory_space=pltpu.MemorySpace.VMEM),  # part_y
                pl.BlockSpec(memory_space=pltpu.MemorySpace.VMEM),  # mask
                pl.BlockSpec(memory_space=pltpu.MemorySpace.VMEM),  # y0 tail
                pl.BlockSpec(memory_space=pltpu.MemorySpace.VMEM),  # 1/counts
            ],
            out_specs=(pl.BlockSpec(memory_space=pltpu.MemorySpace.VMEM),
                       pl.BlockSpec(memory_space=pltpu.MemorySpace.VMEM)),
        )(scal, self.D2, x_p, y_p, m_p, y0_tail, icnt)

        A = a_pad[:, :d]
        AX = ax_pad[:, :m]
        return AX, A


# ----------------------------------------------------------------------------
# NumPy reference (same math / schedule) for a correctness check
# ----------------------------------------------------------------------------
def std_reference_np(x, part_y, mask, y0, D2, tau, lam2, eps, max_iter):
    x = np.asarray(x, np.float64)
    y = np.asarray(part_y, np.float64)
    msk = np.asarray(mask, np.float64)
    D2 = np.asarray(D2, np.float64)
    l = y.shape[0]
    d, m = x.shape
    A = np.zeros((l, d))
    B = np.zeros((l, d))
    y_k = np.asarray(y0, np.float64)
    thr = tau * lam2
    a = 1.0
    for _ in range(max_iter):
        grad = D2 @ A + (msk * (A @ x - y)) @ x.T
        A_t = B - 2.0 * tau * grad
        A_new = np.sign(A_t) * np.maximum(np.abs(A_t) - thr, 0.0)
        a_new = (1.0 + np.sqrt(1.0 + 4.0 * a * a)) / 2.0
        B = A + (a - 1.0) / a_new * (A_new - A)
        A = A_new
        a = a_new
        AX = A @ x
        hs = np.zeros(l + m - 1)
        cnts = np.zeros(l + m - 1)
        for i in range(l):
            for j in range(m):
                hs[i + j] += AX[i, j]
                cnts[i + j] += 1
        ax_vec = hs / cnts
        diff = ax_vec[-l + 1:] - y_k[-l + 1:]
        num = float(np.sum(diff * diff))
        den = float(np.sum(y_k[-l + 1:] ** 2))
        if num <= (eps * eps) * den:
            return A @ x, A
        y_k = ax_vec
    return A @ x, A


if __name__ == "__main__":
    in_feature, in_size, out_size = 8, 16, 7
    L = out_size + 1
    max_iter, eps = 30, 1e-7

    key = jax.random.PRNGKey(0)
    kx, ky, km, kr = jax.random.split(key, 4)
    x = jax.random.normal(kx, (in_feature, in_size), jnp.float32)
    part_y = jax.random.normal(ky, (L, in_size), jnp.float32)
    mask = (jax.random.uniform(km, (L, in_size)) > 0.3).astype(jnp.float32)

    model = STDPallas(in_feature, in_size, out_size,
                      lambda_1=0.1, lambda_2=0.1, max_iter=max_iter, eps=eps)
    pred, A = model.forward(x, part_y, mask, kr)
    jax.block_until_ready((pred, A))

    # reference with the identical scalar schedule / init
    tau = 1.0 / (2.0 * (maxeig_np(np.asarray(x)) + model.lambda_1 * model.eig))
    lam2 = model.lambda_2
    if tau * lam2 > 0.1:
        lam2 = 0.1 / tau
    y0 = np.asarray(jax.random.uniform(kr, (L + in_size - 1,),
                                       dtype=jnp.float32))
    pred_ref, A_ref = std_reference_np(
        np.asarray(x), np.asarray(part_y), np.asarray(mask), y0,
        np.asarray(model.D2), tau, lam2, eps, max_iter)

    assert pred.shape == (L, in_size) and A.shape == (L, in_feature)
    pred_np, A_np = np.asarray(pred), np.asarray(A)
    assert np.all(np.isfinite(pred_np)) and np.all(np.isfinite(A_np))
    assert np.allclose(A_np, A_ref, atol=5e-3, rtol=5e-3), \
        f"A mismatch: max abs err {np.max(np.abs(A_np - A_ref))}"
    assert np.allclose(pred_np, pred_ref, atol=5e-3, rtol=5e-3), \
        f"pred mismatch: max abs err {np.max(np.abs(pred_np - pred_ref))}"
    print("KERNEL_OK")
</pallas_src>

<mosaic_0001>
module attributes {stable_mosaic.version = 11 : i64} {
  func.func @kernel(%arg0: memref<4xf32, #tpu.memory_space<smem>>, %arg1: memref<8x8xf32, #tpu.memory_space<vmem>>, %arg2: memref<128x128xf32, #tpu.memory_space<vmem>>, %arg3: memref<8x128xf32, #tpu.memory_space<vmem>>, %arg4: memref<8x128xf32, #tpu.memory_space<vmem>>, %arg5: memref<1x128xf32, #tpu.memory_space<vmem>>, %arg6: memref<1x128xf32, #tpu.memory_space<vmem>>, %arg7: memref<8x128xf32, #tpu.memory_space<vmem>>, %arg8: memref<8x128xf32, #tpu.memory_space<vmem>>) attributes {dimension_semantics = [], scalar_prefetch = 0 : i64, scratch_operands = 0 : i64, tpu.core_type = #tpu.core_type<tc>} {
    %c0 = arith.constant 0 : index
    %0 = memref.load %arg0[%c0] : memref<4xf32, #tpu.memory_space<smem>>
    %c1 = arith.constant 1 : index
    %1 = memref.load %arg0[%c1] : memref<4xf32, #tpu.memory_space<smem>>
    %c2 = arith.constant 2 : index
    %2 = memref.load %arg0[%c2] : memref<4xf32, #tpu.memory_space<smem>>
    %c3 = arith.constant 3 : index
    %3 = memref.load %arg0[%c3] : memref<4xf32, #tpu.memory_space<smem>>
    %c0_0 = arith.constant 0 : index
    %c0_1 = arith.constant 0 : index
    %4 = vector.load %arg2[%c0_0, %c0_1] : memref<128x128xf32, #tpu.memory_space<vmem>>, vector<128x128xf32>
    %c0_2 = arith.constant 0 : index
    %c0_3 = arith.constant 0 : index
    %5 = vector.load %arg3[%c0_2, %c0_3] : memref<8x128xf32, #tpu.memory_space<vmem>>, vector<8x128xf32>
    %c0_4 = arith.constant 0 : index
    %c0_5 = arith.constant 0 : index
    %6 = vector.load %arg4[%c0_4, %c0_5] : memref<8x128xf32, #tpu.memory_space<vmem>>, vector<8x128xf32>
    %c0_6 = arith.constant 0 : index
    %c0_7 = arith.constant 0 : index
    %7 = vector.load %arg1[%c0_6, %c0_7] : memref<8x8xf32, #tpu.memory_space<vmem>>, vector<8x8xf32>
    %c0_8 = arith.constant 0 : index
    %c0_9 = arith.constant 0 : index
    %8 = vector.load %arg6[%c0_8, %c0_9] : memref<1x128xf32, #tpu.memory_space<vmem>>, vector<1x128xf32>
    %cst = arith.constant 1.000000e+00 : f32
    %9 = vector.broadcast %cst : f32 to vector<1x1xf32>
    %cst_10 = arith.constant 0.000000e+00 : f32
    %10 = vector.broadcast %cst_10 : f32 to vector<8x128xf32>
    %cst_11 = arith.constant 0.000000e+00 : f32
    %11 = vector.broadcast %cst_11 : f32 to vector<8x128xf32>
    %cst_12 = arith.constant 0.000000e+00 : f32
    %12 = vector.broadcast %cst_12 : f32 to vector<8x128xf32>
    %c0_13 = arith.constant 0 : index
    %c0_14 = arith.constant 0 : index
    %13 = vector.load %arg5[%c0_13, %c0_14] : memref<1x128xf32, #tpu.memory_space<vmem>>, vector<1x128xf32>
    %c0_i32 = arith.constant 0 : i32
    %c1_i32 = arith.constant 1 : i32
    %14:7 = scf.while (%arg9 = %c0_i32, %arg10 = %c1_i32, %arg11 = %9, %arg12 = %10, %arg13 = %11, %arg14 = %12, %arg15 = %13) : (i32, i32, vector<1x1xf32>, vector<8x128xf32>, vector<8x128xf32>, vector<8x128xf32>, vector<1x128xf32>) -> (i32, i32, vector<1x1xf32>, vector<8x128xf32>, vector<8x128xf32>, vector<8x128xf32>, vector<1x128xf32>) {
      %c0_i32_19 = arith.constant 0 : i32
      %17 = arith.cmpi sgt, %arg10, %c0_i32_19 : i32
      %c30_i32 = arith.constant 30 : i32
      %18 = arith.cmpi slt, %arg9, %c30_i32 : i32
      %19 = arith.andi %17, %18 : i1
      scf.condition(%19) %arg9, %arg10, %arg11, %arg12, %arg13, %arg14, %arg15 : i32, i32, vector<1x1xf32>, vector<8x128xf32>, vector<8x128xf32>, vector<8x128xf32>, vector<1x128xf32>
    } do {
    ^bb0(%arg9: i32, %arg10: i32, %arg11: vector<1x1xf32>, %arg12: vector<8x128xf32>, %arg13: vector<8x128xf32>, %arg14: vector<8x128xf32>, %arg15: vector<1x128xf32>):
      %cst_19 = arith.constant 4.000000e+00 : f32
      %17 = vector.broadcast %cst_19 : f32 to vector<1x1xf32>
      %18 = arith.mulf %17, %arg11 : vector<1x1xf32>
      %19 = arith.mulf %18, %arg11 : vector<1x1xf32>
      %cst_20 = arith.constant 1.000000e+00 : f32
      %20 = vector.broadcast %cst_20 : f32 to vector<1x1xf32>
      %21 = arith.addf %20, %19 : vector<1x1xf32>
      %22 = math.sqrt %21 : vector<1x1xf32>
      %cst_21 = arith.constant 1.000000e+00 : f32
      %23 = vector.broadcast %cst_21 : f32 to vector<1x1xf32>
      %24 = arith.addf %23, %22 : vector<1x1xf32>
      %cst_22 = arith.constant 5.000000e-01 : f32
      %25 = vector.broadcast %cst_22 : f32 to vector<1x1xf32>
      %26 = arith.mulf %25, %24 : vector<1x1xf32>
      %cst_23 = arith.constant 1.000000e+00 : f32
      %27 = vector.broadcast %cst_23 : f32 to vector<1x1xf32>
      %28 = arith.subf %arg11, %27 : vector<1x1xf32>
      %29 = arith.divf %28, %26 : vector<1x1xf32>
      %30 = arith.subf %arg14, %5 : vector<8x128xf32>
      %31 = arith.mulf %6, %30 : vector<8x128xf32>
      %cst_24 = arith.constant dense<0.000000e+00> : vector<8x128xf32>
      %32 = tpu.matmul %7, %arg12, %cst_24 {dimension_numbers = #tpu.dot_dimension_numbers<[1], [0], [0], [1], [0, 0, 1, 1], [], []>} : vector<8x8xf32>, vector<8x128xf32>, vector<8x128xf32> -> vector<8x128xf32>
      %cst_25 = arith.constant dense<0.000000e+00> : vector<8x128xf32>
      %33 = tpu.matmul %31, %4, %cst_25 {dimension_numbers = #tpu.dot_dimension_numbers<[1], [1], [0], [0], [0, 0, 1, 0], [], []>} : vector<8x128xf32>, vector<128x128xf32>, vector<8x128xf32> -> vector<8x128xf32>
      %34 = arith.addf %32, %33 : vector<8x128xf32>
      %35 = vector.broadcast %0 : f32 to vector<8x128xf32>
      %36 = arith.mulf %35, %34 : vector<8x128xf32>
      %37 = arith.subf %arg13, %36 : vector<8x128xf32>
      %38 = vector.broadcast %3 : f32 to vector<8x128xf32>
      %39 = arith.maximumf %38, %37 : vector<8x128xf32>
      %40 = vector.broadcast %1 : f32 to vector<8x128xf32>
      %41 = arith.minimumf %40, %39 : vector<8x128xf32>
      %42 = arith.subf %37, %41 : vector<8x128xf32>
      %43 = arith.subf %42, %arg12 : vector<8x128xf32>
      %44 = vector.broadcast %29 : vector<1x1xf32> to vector<8x128xf32>
      %45 = arith.mulf %44, %43 : vector<8x128xf32>
      %46 = arith.addf %arg12, %45 : vector<8x128xf32>
      %cst_26 = arith.constant dense<0.000000e+00> : vector<8x128xf32>
      %47 = tpu.matmul %42, %4, %cst_26 {dimension_numbers = #tpu.dot_dimension_numbers<[1], [0], [0], [1], [0, 0, 1, 1], [], []>} : vector<8x128xf32>, vector<128x128xf32>, vector<8x128xf32> -> vector<8x128xf32>
      %c0_i32_27 = arith.constant 0 : i32
      %48 = tpu.dynamic_rotate %47 by %c0_i32_27 dim 1 {stride = 1 : si32, stride_dimension = 0 : si32} : vector<8x128xf32>, i32 -> vector<8x128xf32>
      %cst_28 = arith.constant dense<0.000000e+00> : vector<128xf32>
      %49 = vector.multi_reduction <add>, %48, %cst_28 [0] : vector<8x128xf32> to vector<128xf32>
      %50 = vector.shape_cast %49 : vector<128xf32> to vector<1x128xf32>
      %51 = arith.mulf %50, %8 : vector<1x128xf32>
      %52 = arith.subf %51, %arg15 : vector<1x128xf32>
      %53 = arith.mulf %52, %52 : vector<1x128xf32>
      %cst_29 = arith.constant dense<0.000000e+00> : vector<1xf32>
      %54 = vector.multi_reduction <add>, %53, %cst_29 [1] : vector<1x128xf32> to vector<1xf32>
      %55 = vector.shape_cast %54 : vector<1xf32> to vector<1x1xf32>
      %56 = arith.mulf %arg15, %arg15 : vector<1x128xf32>
      %cst_30 = arith.constant dense<0.000000e+00> : vector<1xf32>
      %57 = vector.multi_reduction <add>, %56, %cst_30 [1] : vector<1x128xf32> to vector<1xf32>
      %58 = vector.shape_cast %57 : vector<1xf32> to vector<1x1xf32>
      %59 = vector.broadcast %2 : f32 to vector<1x1xf32>
      %60 = arith.mulf %59, %58 : vector<1x1xf32>
      %61 = arith.cmpf ogt, %55, %60 : vector<1x1xf32>
      %62 = arith.extui %61 : vector<1x1xi1> to vector<1x1xi32>
      %63 = vector.extract %62[0, 0] : i32 from vector<1x1xi32>
      %c1_i32_31 = arith.constant 1 : i32
      %64 = arith.addi %arg9, %c1_i32_31 : i32
      scf.yield %64, %63, %26, %42, %46, %47, %51 : i32, i32, vector<1x1xf32>, vector<8x128xf32>, vector<8x128xf32>, vector<8x128xf32>, vector<1x128xf32>
    }
    %c0_15 = arith.constant 0 : index
    %c0_16 = arith.constant 0 : index
    %15 = vector.load %arg7[%c0_15, %c0_16] : memref<8x128xf32, #tpu.memory_space<vmem>>, vector<8x128xf32>
    tpu.vector_store %arg7[%c0_15, %c0_16], %14#3 {strides = array<i32>} : memref<8x128xf32, #tpu.memory_space<vmem>>, vector<8x128xf32>,
    %c0_17 = arith.constant 0 : index
    %c0_18 = arith.constant 0 : index
    %16 = vector.load %arg8[%c0_17, %c0_18] : memref<8x128xf32, #tpu.memory_space<vmem>>, vector<8x128xf32>
    tpu.vector_store %arg8[%c0_17, %c0_18], %14#5 {strides = array<i32>} : memref<8x128xf32, #tpu.memory_space<vmem>>, vector<8x128xf32>,
    return
  }
}

</mosaic_0001>

<llo_original>
// kernel: tpu_custom_call.1
$region0: #{tpu_custom_call.1}
  #allocation0 [shape = 'u32[]', space=smem, size = 0x4, offset = 0x4, fixed_abs, tag = 'smem constant byte address 0x4 - core index']
  #allocation1 [shape = 'u32[144,128]{1,0:T(1,128)}', space=vmem, size = 0x12000, scoped, tag = 'internal scratch']
  %s0 = inlined_call_operand.hbm [shape: f32[4], index: 0, kind: input, shape index: {}]
  %s1 = inlined_call_operand.hbm [shape: f32[8,8], index: 1, kind: input, shape index: {}]
  %s2 = inlined_call_operand.hbm [shape: f32[128,128], index: 2, kind: input, shape index: {}]
  %s3 = inlined_call_operand.hbm [shape: f32[8,128], index: 3, kind: input, shape index: {}]
  %s4 = inlined_call_operand.hbm [shape: f32[8,128], index: 4, kind: input, shape index: {}]
  %s5 = inlined_call_operand.vmem [shape: f32[1,128], index: 5, kind: input, shape index: {}]
  %s6 = inlined_call_operand.vmem [shape: f32[1,128], index: 6, kind: input, shape index: {}]
  %s7 = inlined_call_operand.hbm [shape: f32[8,128], index: 7, kind: output, shape index: {0}]
  %s8 = inlined_call_operand.hbm [shape: f32[8,128], index: 8, kind: output, shape index: {1}]
  %9 = xla_tuple %s7, %s8
  %s10 = sld [smem:[#allocation0]]
  $region73: #{tpu_custom_call.1} parent=0
    _
  %s12 = ssub.s32 1, %s10
  %s13 = scalar_select 0, %s12, %s10
  $region1: #{tpu_custom_call.1} parent=0
    #allocation2 [shape = 'u8[512]{0}', space=smem, size = 0x200, scoped, tag = 'input window, operand 0, single buffered']
    #allocation3 [shape = 's32[1]{0}', space=sflag, size = 0x4, scoped, tag = 'scoped memory for tpu_custom_call.1']
    #allocation4 [shape = 's32[1]{0}', space=sflag, size = 0x4, scoped, tag = 'scoped memory for tpu_custom_call.1']
    #allocation5 [shape = 's32[1]{0}', space=sflag, size = 0x4, scoped, tag = 'scoped memory for tpu_custom_call.1']
    #allocation6 [shape = 'u8[4096]{0}', space=vmem, size = 0x1000, scoped, tag = 'input window, operand 1, single buffered']
    #allocation7 [shape = 'u8[65536]{0}', space=vmem, size = 0x10000, scoped, tag = 'input window, operand 2, single buffered']
    #allocation8 [shape = 's32[1]{0}', space=sflag, size = 0x4, scoped, tag = 'scoped memory for tpu_custom_call.1']
    #allocation9 [shape = 'u8[4096]{0}', space=vmem, size = 0x1000, scoped, tag = 'input window, operand 3, single buffered']
    #allocation10 [shape = 'u8[4096]{0}', space=vmem, size = 0x1000, scoped, tag = 'input window, operand 4, single buffered']
    #allocation11 [shape = 's32[1]{0}', space=sflag, size = 0x4, scoped, tag = 'scoped memory for tpu_custom_call.1']
    #allocation12 [shape = 'u8[4096]{0}', space=vmem, size = 0x1000, scoped, tag = 'output window, operand 0, single buffered']
    #allocation13 [shape = 'u8[4096]{0}', space=vmem, size = 0x1000, scoped, tag = 'output window, operand 1, single buffered']
    #allocation14 [shape = 's32[1]{0}', space=sflag, size = 0x4, scoped, tag = 'scoped memory for tpu_custom_call.1']
    %14 = vsyncpa [#allocation5], 0
    %15 = vsyncpa [#allocation3], 0
    %16 = vsyncpa [#allocation8], 0
    %17 = vsyncpa [#allocation11], 0
    %18 = vsyncpa [#allocation4], 0
    %19 = vsyncpa [#allocation14], 0
    // Predicated region
    $region2: #{tpu_custom_call.1} parent=1 // pred_check
      _
    $region3: #{tpu_custom_call.1} parent=1 // pred_check_branch
      %21 = sbr.rel (0) target = $region5
    $region4: #{tpu_custom_call.1} parent=1 // pred_region
      %s23 = ssub.s32 16, 16
      %24 = vsyncadd [#allocation5], %s23
      %27 = dma.hbm_to_smem %s0, 16, [#allocation2], [#allocation5]
    $region5: #{tpu_custom_call.1} parent=1 // pred_fallthru
      _
    // Predicated region
    $region6: #{tpu_custom_call.1} parent=1 // pred_check
      _
    $region7: #{tpu_custom_call.1} parent=1 // pred_check_branch
      %29 = sbr.rel (0) target = $region9
    $region8: #{tpu_custom_call.1} parent=1 // pred_region
      %s31 = ssub.s32 128, 128
      %32 = vsyncadd [#allocation3], %s31
      %s34 = sshll.u32 [#allocation6], 4
      %s35 = int_to_ptr.vmem [resolvable:$true] %s34
      %37 = dma.hbm_to_vmem [thread:$0]  %s1, 128, %s35, [#allocation3]
    $region9: #{tpu_custom_call.1} parent=1 // pred_fallthru
      _
    // Predicated region
    $region10: #{tpu_custom_call.1} parent=1 // pred_check
      _
    $region11: #{tpu_custom_call.1} parent=1 // pred_check_branch
      %39 = sbr.rel (0) target = $region13
    $region12: #{tpu_custom_call.1} parent=1 // pred_region
      %s41 = ssub.s32 2048, 2048
      %42 = vsyncadd [#allocation8], %s41
      %s43 = sshll.u32 [#allocation7], 4
      %s44 = int_to_ptr.vmem [resolvable:$true] %s43
      %49 = dma.hbm_to_vmem [thread:$0]  %s2, 2048, %s44, [#allocation8], 128, 128, 8
    $region13: #{tpu_custom_call.1} parent=1 // pred_fallthru
      _
    // Predicated region
    $region14: #{tpu_custom_call.1} parent=1 // pred_check
      _
    $region15: #{tpu_custom_call.1} parent=1 // pred_check_branch
      %51 = sbr.rel (0) target = $region17
    $region16: #{tpu_custom_call.1} parent=1 // pred_region
      %s53 = ssub.s32 128, 128
      %54 = vsyncadd [#allocation8], %s53
      %s56 = sshll.u32 [#allocation9], 4
      %s57 = int_to_ptr.vmem [resolvable:$true] %s56
      %59 = dma.hbm_to_vmem [thread:$0]  %s3, 128, %s57, [#allocation8]
    $region17: #{tpu_custom_call.1} parent=1 // pred_fallthru
      _
    // Predicated region
    $region18: #{tpu_custom_call.1} parent=1 // pred_check
      _
    $region19: #{tpu_custom_call.1} parent=1 // pred_check_branch
      %61 = sbr.rel (0) target = $region21
    $region20: #{tpu_custom_call.1} parent=1 // pred_region
      %s63 = ssub.s32 128, 128
      %64 = vsyncadd [#allocation11], %s63
      %s66 = sshll.u32 [#allocation10], 4
      %s67 = int_to_ptr.vmem [resolvable:$true] %s66
      %69 = dma.hbm_to_vmem [thread:$0]  %s4, 128, %s67, [#allocation11]
    $region21: #{tpu_custom_call.1} parent=1 // pred_fallthru
      _
    // Predicated region
    $region22: #{tpu_custom_call.1} parent=1 // pred_check
      _
    $region23: #{tpu_custom_call.1} parent=1 // pred_check_branch
      %71 = sbr.rel (0) target = $region25
    $region24: #{tpu_custom_call.1} parent=1 // pred_region
      _
    $region25: #{tpu_custom_call.1} parent=1 // pred_fallthru
      _
    // Predicated region
    $region26: #{tpu_custom_call.1} parent=1 // pred_check
      _
    $region27: #{tpu_custom_call.1} parent=1 // pred_check_branch
      %73 = sbr.rel (0) target = $region29
    $region28: #{tpu_custom_call.1} parent=1 // pred_region
      _
    $region29: #{tpu_custom_call.1} parent=1 // pred_fallthru
      _
    // Predicated region
    $region30: #{tpu_custom_call.1} parent=1 // pred_check
      _
    $region31: #{tpu_custom_call.1} parent=1 // pred_check_branch
      %75 = sbr.rel (0) target = $region33
    $region32: #{tpu_custom_call.1} parent=1 // pred_region
      %76 = dma.done [#allocation5], 16
    $region33: #{tpu_custom_call.1} parent=1 // pred_fallthru
      _
    // Predicated region
    $region34: #{tpu_custom_call.1} parent=1 // pred_check
      _
    $region35: #{tpu_custom_call.1} parent=1 // pred_check_branch
      %78 = sbr.rel (0) target = $region37
    $region36: #{tpu_custom_call.1} parent=1 // pred_region
      %79 = dma.done [#allocation3], 128
    $region37: #{tpu_custom_call.1} parent=1 // pred_fallthru
      _
    // Predicated region
    $region38: #{tpu_custom_call.1} parent=1 // pred_check
      _
    $region39: #{tpu_custom_call.1} parent=1 // pred_check_branch
      %81 = sbr.rel (0) target = $region41
    $region40: #{tpu_custom_call.1} parent=1 // pred_region
      %82 = dma.done [#allocation8], 2048
    $region41: #{tpu_custom_call.1} parent=1 // pred_fallthru
      _
    // Predicated region
    $region42: #{tpu_custom_call.1} parent=1 // pred_check
      _
    $region43: #{tpu_custom_call.1} parent=1 // pred_check_branch
      %84 = sbr.rel (0) target = $region45
    $region44: #{tpu_custom_call.1} parent=1 // pred_region
      %85 = dma.done [#allocation8], 128
    $region45: #{tpu_custom_call.1} parent=1 // pred_fallthru
      _
    // Predicated region
    $region46: #{tpu_custom_call.1} parent=1 // pred_check
      _
    $region47: #{tpu_custom_call.1} parent=1 // pred_check_branch
      %87 = sbr.rel (0) target = $region49
    $region48: #{tpu_custom_call.1} parent=1 // pred_region
      %88 = dma.done [#allocation11], 128
    $region49: #{tpu_custom_call.1} parent=1 // pred_fallthru
      _
    %89 = sfence
    %s90 = sld [smem:[#allocation2]]
    %s91 = sld [smem:[#allocation2 + $0x1]]
    %s92 = sld [smem:[#allocation2 + $0x2]]
    %s93 = sld [smem:[#allocation2 + $0x3]]
    %v94 = vld [vmem:[#allocation7] sm:$0xff]
    %v95 = vld [vmem:[#allocation7 + $0x8] sm:$0xff]
    %v96 = vld [vmem:[#allocation7 + $0x10] sm:$0xff]
    %v97 = vld [vmem:[#allocation7 + $0x18] sm:$0xff]
    %v98 = vld [vmem:[#allocation7 + $0x20] sm:$0xff]
    %v99 = vld [vmem:[#allocation7 + $0x28] sm:$0xff]
    %v100 = vld [vmem:[#allocation7 + $0x30] sm:$0xff]
    %v101 = vld [vmem:[#allocation7 + $0x38] sm:$0xff]
    %v102 = vld [vmem:[#allocation7 + $0x40] sm:$0xff]
    %v103 = vld [vmem:[#allocation7 + $0x48] sm:$0xff]
    %v104 = vld [vmem:[#allocation7 + $0x50] sm:$0xff]
    %v105 = vld [vmem:[#allocation7 + $0x58] sm:$0xff]
    %v106 = vld [vmem:[#allocation7 + $0x60] sm:$0xff]
    %v107 = vld [vmem:[#allocation7 + $0x68] sm:$0xff]
    %v108 = vld [vmem:[#allocation7 + $0x70] sm:$0xff]
    %v109 = vld [vmem:[#allocation7 + $0x78] sm:$0xff]
    %v110 = vld [vmem:[#allocation9] sm:$0xff]
    %v111 = vld [vmem:[#allocation10] sm:$0xff]
    %v112 = vld [vmem:[#allocation6] sm:$0xff]
    %v113 = vld [vmem:[%s6] sm:$0x1]
    %v114 = vld [vmem:[%s5] sm:$0x1]
    // While loop
    $region50: #{tpu_custom_call.1} parent=1 // loop_pre_header
      _
    $region51: #{tpu_custom_call.1} parent=1 // loop_header
      %s116 = sphi 0, %s396
      %s117 = sphi 1, %s395
      %v118 = vphi 1.0, %v140
      %v119 = vphi 0.0, %v297
      %v120 = vphi 0.0, %v300
      %v121 = vphi 0.0, %v368
      %v122 = vphi %v114, %v380
      %p123 = scmp.gt.s32.totalorder %s117, 0
      %p124 = scmp.lt.s32.totalorder %s116, 30
      %p125 = pnand %p123, %p124
      %p126 = pneg %p125
    $region52: #{tpu_custom_call.1} parent=1 // loop_header_branch
      %128 = sbr.rel (%p125) target = $region56
    $region53: #{tpu_custom_call.1} parent=1 // loop_body
      %v129 = vmul.f32 %v118, 4.0
      %v130 = vmul.f32 %v129, %v118
      %v131 = vadd.f32 %v130, 1.0
      %v132 = vrsqrt.pop %v131
      %v133 = vmul.f32 %v131, %v132
      %vm134 = vcmp.eq.f32.partialorder %v131, inf
      %v135 = vsel %vm134, %v131, %v133
      %vm136 = vcmp.eq.f32.partialorder %v131, 0.0
      %v137 = vand.u32 %v131, 2147483648
      %v138 = vsel %vm136, %v137, %v135
      %v139 = vadd.f32 %v138, 1.0
      %v140 = vmul.f32 %v139, 0.5
      %v141 = vsub.f32 %v118, 1.0
      %v142 = vrcp.pop %v140
      %v143 = vmul.f32 %v141, %v142
      %v144 = vsub.f32 %v121, %v110
      %v145 = vmul.f32 %v111, %v144
      %146 = vmatprep.subr.mxu0 0.0
      %147 = vmatpush1.xpose.msra.mxu0 %v109
      %148 = vmatprep.subr.mxu0 0.0
      %149 = vmatpush1.xpose.msra.mxu0 %v108
      %150 = vmatprep.subr.mxu0 0.0
      %151 = vmatpush1.xpose.msra.mxu0 %v107
      %152 = vmatprep.subr.mxu0 0.0
      %153 = vmatpush1.xpose.msra.mxu0 %v106
      %154 = vmatprep.subr.mxu0 0.0
      %155 = vmatpush1.xpose.msra.mxu0 %v105
      %156 = vmatprep.subr.mxu0 0.0
      %157 = vmatpush1.xpose.msra.mxu0 %v104
      %158 = vmatprep.subr.mxu0 0.0
      %159 = vmatpush1.xpose.msra.mxu0 %v103
      %160 = vmatprep.subr.mxu0 0.0
      %161 = vmatpush1.xpose.msra.mxu0 %v102
      %162 = vmatprep.subr.mxu0 0.0
      %163 = vmatpush1.xpose.msra.mxu0 %v101
      %164 = vmatprep.subr.mxu0 0.0
      %165 = vmatpush1.xpose.msra.mxu0 %v100
      %166 = vmatprep.subr.mxu0 0.0
      %167 = vmatpush1.xpose.msra.mxu0 %v99
      %168 = vmatprep.subr.mxu0 0.0
      %169 = vmatpush1.xpose.msra.mxu0 %v98
      %170 = vmatprep.subr.mxu0 0.0
      %171 = vmatpush1.xpose.msra.mxu0 %v97
      %172 = vmatprep.subr.mxu0 0.0
      %173 = vmatpush1.xpose.msra.mxu0 %v96
      %174 = vmatprep.subr.mxu0 0.0
      %175 = vmatpush1.xpose.msra.mxu0 %v95
      %176 = vmatprep.subr.mxu0 0.0
      %177 = vmatpush1.xpose.msra.mxu0 %v94
      %178 = vmatprep.subr.mxu0 0.0
      %179 = vmatpush2.xpose.msra.mxu0 0.0
      %180 = vmatprep.subr.mxu0 0.0
      %181 = vmatpush2.xpose.msra.mxu0 0.0
      %182 = vmatprep.subr.mxu0 0.0
      %183 = vmatpush2.xpose.msra.mxu0 0.0
      %184 = vmatprep.subr.mxu0 0.0
      %185 = vmatpush2.xpose.msra.mxu0 0.0
      %186 = vmatprep.subr.mxu0 0.0
      %187 = vmatpush2.xpose.msra.mxu0 0.0
      %188 = vmatprep.subr.mxu0 0.0
      %189 = vmatpush2.xpose.msra.mxu0 0.0
      %190 = vmatprep.subr.mxu0 0.0
      %191 = vmatpush2.xpose.msra.mxu0 0.0
      %192 = vmatprep.subr.mxu0 0.0
      %193 = vmatpush2.xpose.msra.mxu0 0.0
      %194 = vmatprep.subr.mxu0 0.0
      %195 = vmatpush2.xpose.msra.mxu0 0.0
      %196 = vmatprep.subr.mxu0 0.0
      %197 = vmatpush2.xpose.msra.mxu0 0.0
      %198 = vmatprep.subr.mxu0 0.0
      %199 = vmatpush2.xpose.msra.mxu0 0.0
      %200 = vmatprep.subr.mxu0 0.0
      %201 = vmatpush2.xpose.msra.mxu0 0.0
      %202 = vmatprep.subr.mxu0 0.0
      %203 = vmatpush2.xpose.msra.mxu0 0.0
      %204 = vmatprep.subr.mxu0 0.0
      %205 = vmatpush2.xpose.msra.mxu0 0.0
      %206 = vmatprep.subr.mxu0 0.0
      %207 = vmatpush2.xpose.msra.mxu0 0.0
      %208 = vmatprep.subr.mxu0 0.0
      %209 = vmatpush2.xpose.msra.mxu0 0.0
      %210 = vmatprep.mubr.f32.mxu0 0.0
      %211 = vmatmul.mubr.f32.gmra.mxu0 %v145
      %v212 = vpop.f32.mrf.mxu0
      %v213 = vadd.f32 0.0, %v212
      %v214 = vpop.f32.mrf.mxu0
      %215 = vdwg.mxu0
      %vm216 = vcmask 64512
      %v218 = vsel %vm216, %v112, 0
      %220 = vmatprep.subr.mxu0 0.0
      %221 = vmatpush1.msra.mxu0 0.0
      %222 = vmatprep.subr.mxu0 0.0
      %223 = vmatpush1.msra.mxu0 0.0
      %224 = vmatprep.subr.mxu0 0.0
      %225 = vmatpush1.msra.mxu0 0.0
      %226 = vmatprep.subr.mxu0 0.0
      %227 = vmatpush1.msra.mxu0 0.0
      %228 = vmatprep.subr.mxu0 0.0
      %229 = vmatpush1.msra.mxu0 0.0
      %230 = vmatprep.subr.mxu0 0.0
      %231 = vmatpush1.msra.mxu0 0.0
      %232 = vmatprep.subr.mxu0 0.0
      %233 = vmatpush1.msra.mxu0 0.0
      %234 = vmatprep.subr.mxu0 0.0
      %235 = vmatpush1.msra.mxu0 0.0
      %236 = vmatprep.subr.mxu0 0.0
      %237 = vmatpush1.msra.mxu0 0.0
      %238 = vmatprep.subr.mxu0 0.0
      %239 = vmatpush1.msra.mxu0 0.0
      %240 = vmatprep.subr.mxu0 0.0
      %241 = vmatpush1.msra.mxu0 0.0
      %242 = vmatprep.subr.mxu0 0.0
      %243 = vmatpush1.msra.mxu0 0.0
      %244 = vmatprep.subr.mxu0 0.0
      %245 = vmatpush1.msra.mxu0 0.0
      %246 = vmatprep.subr.mxu0 0.0
      %247 = vmatpush1.msra.mxu0 0.0
      %248 = vmatprep.subr.mxu0 0.0
      %249 = vmatpush1.msra.mxu0 0.0
      %250 = vmatprep.subr.mxu0 0.0
      %251 = vmatpush1.msra.mxu0 %v119
      %252 = vmatprep.subr.mxu0 0.0
      %253 = vmatpush2.msra.mxu0 0.0
      %254 = vmatprep.subr.mxu0 0.0
      %255 = vmatpush2.msra.mxu0 0.0
      %256 = vmatprep.subr.mxu0 0.0
      %257 = vmatpush2.msra.mxu0 0.0
      %258 = vmatprep.subr.mxu0 0.0
      %259 = vmatpush2.msra.mxu0 0.0
      %260 = vmatprep.subr.mxu0 0.0
      %261 = vmatpush2.msra.mxu0 0.0
      %262 = vmatprep.subr.mxu0 0.0
      %263 = vmatpush2.msra.mxu0 0.0
      %264 = vmatprep.subr.mxu0 0.0
      %265 = vmatpush2.msra.mxu0 0.0
      %266 = vmatprep.subr.mxu0 0.0
      %267 = vmatpush2.msra.mxu0 0.0
      %268 = vmatprep.subr.mxu0 0.0
      %269 = vmatpush2.msra.mxu0 0.0
      %270 = vmatprep.subr.mxu0 0.0
      %271 = vmatpush2.msra.mxu0 0.0
      %272 = vmatprep.subr.mxu0 0.0
      %273 = vmatpush2.msra.mxu0 0.0
      %274 = vmatprep.subr.mxu0 0.0
      %275 = vmatpush2.msra.mxu0 0.0
      %276 = vmatprep.subr.mxu0 0.0
      %277 = vmatpush2.msra.mxu0 0.0
      %278 = vmatprep.subr.mxu0 0.0
      %279 = vmatpush2.msra.mxu0 0.0
      %280 = vmatprep.subr.mxu0 0.0
      %281 = vmatpush2.msra.mxu0 0.0
      %282 = vmatprep.subr.mxu0 0.0
      %283 = vmatpush2.msra.mxu0 0.0
      %284 = vmatprep.mubr.f32.mxu0 0.0
      %285 = vmatmul.mubr.f32.gmra.mxu0 %v218
      %v286 = vpop.f32.mrf.mxu0
      %v287 = vadd.f32 %v213, %v286
      %v288 = vpop.f32.mrf.mxu0
      %289 = vdwg.mxu0
      %v290 = vstv %s90
      %v291 = vmul.f32 %v290, %v287
      %v292 = vsub.f32 %v120, %v291
      %v293 = vstv %s93
      %v294 = vmax.f32 %v293, %v292
      %v295 = vstv %s91
      %v296 = vmin.f32 %v295, %v294
      %v297 = vsub.f32 %v292, %v296
      %v298 = vsub.f32 %v297, %v119
      %v299 = vmul.f32 %v143, %v298
      %v300 = vadd.f32 %v119, %v299
      %301 = vmatprep.subr.mxu0 0.0
      %302 = vmatpush1.msra.mxu0 %v109
      %303 = vmatprep.subr.mxu0 0.0
      %304 = vmatpush1.msra.mxu0 %v108
      %305 = vmatprep.subr.mxu0 0.0
      %306 = vmatpush1.msra.mxu0 %v107
      %307 = vmatprep.subr.mxu0 0.0
      %308 = vmatpush1.msra.mxu0 %v106
      %309 = vmatprep.subr.mxu0 0.0
      %310 = vmatpush1.msra.mxu0 %v105
      %311 = vmatprep.subr.mxu0 0.0
      %312 = vmatpush1.msra.mxu0 %v104
      %313 = vmatprep.subr.mxu0 0.0
      %314 = vmatpush1.msra.mxu0 %v103
      %315 = vmatprep.subr.mxu0 0.0
      %316 = vmatpush1.msra.mxu0 %v102
      %317 = vmatprep.subr.mxu0 0.0
      %318 = vmatpush1.msra.mxu0 %v101
      %319 = vmatprep.subr.mxu0 0.0
      %320 = vmatpush1.msra.mxu0 %v100
      %321 = vmatprep.subr.mxu0 0.0
      %322 = vmatpush1.msra.mxu0 %v99
      %323 = vmatprep.subr.mxu0 0.0
      %324 = vmatpush1.msra.mxu0 %v98
      %325 = vmatprep.subr.mxu0 0.0
      %326 = vmatpush1.msra.mxu0 %v97
      %327 = vmatprep.subr.mxu0 0.0
      %328 = vmatpush1.msra.mxu0 %v96
      %329 = vmatprep.subr.mxu0 0.0
      %330 = vmatpush1.msra.mxu0 %v95
      %331 = vmatprep.subr.mxu0 0.0
      %332 = vmatpush1.msra.mxu0 %v94
      %333 = vmatprep.subr.mxu0 0.0
      %334 = vmatpush2.msra.mxu0 0.0
      %335 = vmatprep.subr.mxu0 0.0
      %336 = vmatpush2.msra.mxu0 0.0
      %337 = vmatprep.subr.mxu0 0.0
      %338 = vmatpush2.msra.mxu0 0.0
      %339 = vmatprep.subr.mxu0 0.0
      %340 = vmatpush2.msra.mxu0 0.0
      %341 = vmatprep.subr.mxu0 0.0
      %342 = vmatpush2.msra.mxu0 0.0
      %343 = vmatprep.subr.mxu0 0.0
      %344 = vmatpush2.msra.mxu0 0.0
      %345 = vmatprep.subr.mxu0 0.0
      %346 = vmatpush2.msra.mxu0 0.0
      %347 = vmatprep.subr.mxu0 0.0
      %348 = vmatpush2.msra.mxu0 0.0
      %349 = vmatprep.subr.mxu0 0.0
      %350 = vmatpush2.msra.mxu0 0.0
      %351 = vmatprep.subr.mxu0 0.0
      %352 = vmatpush2.msra.mxu0 0.0
      %353 = vmatprep.subr.mxu0 0.0
      %354 = vmatpush2.msra.mxu0 0.0
      %355 = vmatprep.subr.mxu0 0.0
      %356 = vmatpush2.msra.mxu0 0.0
      %357 = vmatprep.subr.mxu0 0.0
      %358 = vmatpush2.msra.mxu0 0.0
      %359 = vmatprep.subr.mxu0 0.0
      %360 = vmatpush2.msra.mxu0 0.0
      %361 = vmatprep.subr.mxu0 0.0
      %362 = vmatpush2.msra.mxu0 0.0
      %363 = vmatprep.subr.mxu0 0.0
      %364 = vmatpush2.msra.mxu0 0.0
      %365 = vmatprep.mubr.f32.mxu0 0.0
      %366 = vmatmul.mubr.f32.gmra.mxu0 %v297
      %v367 = vpop.f32.mrf.mxu0
      %v368 = vadd.f32 0.0, %v367
      %v369 = vpop.f32.mrf.mxu0
      %370 = vdwg.mxu0
      %372 = vrot.lane.b32.xlu0 %v368, 256
      %v373 = vpop.permute.xlu0 %372
      %v374 = vrot.slane %v373, 4
      %v375 = vadd.f32 %v373, %v374
      %v376 = vrot.slane %v375, 2
      %v377 = vadd.f32 %v375, %v376
      %v378 = vrot.slane %v377, 1
      %v379 = vadd.f32 %v377, %v378
      %v380 = vmul.f32 %v379, %v113
      %v381 = vsub.f32 %v380, %v122
      %v382 = vmul.f32 %v381, %v381
      %vm383 = vcmask 1040384
      %v384 = vsel %vm383, %v382, 0.0
      %385 = vadd.xlane.f32.xlu0 %v384
      %v386 = vpop.xlane.xlu0 %385
      %v387 = vmul.f32 %v122, %v122
      %v388 = vsel %vm383, %v387, 0.0
      %389 = vadd.xlane.f32.xlu0 %v388
      %v390 = vpop.xlane.xlu0 %389
      %v391 = vstv %s92
      %v392 = vmul.f32 %v391, %v390
      %vm393 = vcmp.gt.f32.partialorder %v386, %v392
      %v394 = vsel %vm393, 1, 0
      %s395 = vtos %v394
      %s396 = sadd.s32 %s116, 1
    $region54: #{tpu_custom_call.1} parent=1 // loop_footer
      _
    $region55: #{tpu_custom_call.1} parent=1 // loop_footer_branch
      %115 = sbr.rel target = $region51
    $region56: #{tpu_custom_call.1} parent=1 // loop_exit
      _
    %397 = vst [vmem:[#allocation12] sm:$0xff] %v119
    %398 = vst [vmem:[#allocation13] sm:$0xff] %v121
    // Predicated region
    $region57: #{tpu_custom_call.1} parent=1 // pred_check
      _
    $region58: #{tpu_custom_call.1} parent=1 // pred_check_branch
      %400 = sbr.rel (0) target = $region60
    $region59: #{tpu_custom_call.1} parent=1 // pred_region
      %s402 = ssub.s32 128, 128
      %403 = vsyncadd [#allocation4], %s402
      %s405 = sshll.u32 [#allocation12], 4
      %s406 = int_to_ptr.vmem [resolvable:$true] %s405
      %408 = dma.vmem_to_hbm [thread:$0]  %s406, 128, %s7, [#allocation4]
    $region60: #{tpu_custom_call.1} parent=1 // pred_fallthru
      _
    // Predicated region
    $region61: #{tpu_custom_call.1} parent=1 // pred_check
      _
    $region62: #{tpu_custom_call.1} parent=1 // pred_check_branch
      %410 = sbr.rel (0) target = $region64
    $region63: #{tpu_custom_call.1} parent=1 // pred_region
      %s412 = ssub.s32 128, 128
      %413 = vsyncadd [#allocation14], %s412
      %s415 = sshll.u32 [#allocation13], 4
      %s416 = int_to_ptr.vmem [resolvable:$true] %s415
      %418 = dma.vmem_to_hbm [thread:$0]  %s416, 128, %s8, [#allocation14]
    $region64: #{tpu_custom_call.1} parent=1 // pred_fallthru
      _
    // Predicated region
    $region65: #{tpu_custom_call.1} parent=1 // pred_check
      _
    $region66: #{tpu_custom_call.1} parent=1 // pred_check_branch
      %420 = sbr.rel (0) target = $region68
    $region67: #{tpu_custom_call.1} parent=1 // pred_region
      %421 = dma.done [#allocation4], 128
    $region68: #{tpu_custom_call.1} parent=1 // pred_fallthru
      _
    // Predicated region
    $region69: #{tpu_custom_call.1} parent=1 // pred_check
      _
    $region70: #{tpu_custom_call.1} parent=1 // pred_check_branch
      %423 = sbr.rel (0) target = $region72
    $region71: #{tpu_custom_call.1} parent=1 // pred_region
      %424 = dma.done [#allocation14], 128
    $region72: #{tpu_custom_call.1} parent=1 // pred_fallthru
      _
    %425 = vsyncpa [#allocation3], 1
    %426 = vsyncpa [#allocation8], 1
    %427 = vsyncpa [#allocation11], 1
    %428 = vsyncpa [#allocation4], 1
    %429 = vsyncpa [#allocation14], 1
    %430 = vsyncpa [#allocation5], 1

</llo_original>
